<compile_context>
chip_gen: v7x
topology: tpu7x:2x2x1
jax: 0.10.0
libtpu: 0.0.40
codegen_flags: <defaults>
</compile_context>

<pallas_src>
import jax
import jax.numpy as jnp
from jax.experimental import pallas as pl
from jax.experimental.pallas import tpu as pltpu


def _bn_relu_kernel(x_ref, scale_ref, shift_ref, o_ref):
    # x_ref     : (TR, L)  rows = flattened (n, c), cols = flattened (h, w)
    # scale_ref : (TR, 1)  per-row BN scale   (gamma / sqrt(var + eps)), f32
    # shift_ref : (TR, 1)  per-row BN shift   (beta - mean * scale),     f32
    # o_ref     : (TR, L)  same dtype as the input
    x = x_ref[...].astype(jnp.float32)
    y = x * scale_ref[...] + shift_ref[...]          # lane-broadcast FMA
    o_ref[...] = jnp.maximum(y, 0.0).astype(o_ref.dtype)


def post_activation(x_nchw, gamma, beta, running_mean, running_var, eps=1e-5):
    """Forward of PostActivation: BatchNorm2d (inference) followed by ReLU."""
    N, C, H, W = x_nchw.shape
    dtype = x_nchw.dtype
    L = H * W
    R = N * C

    # Fold BN into a per-channel affine transform (f32 for accuracy).
    scale_c = (gamma.astype(jnp.float32)
               / jnp.sqrt(running_var.astype(jnp.float32) + eps))
    shift_c = beta.astype(jnp.float32) - running_mean.astype(jnp.float32) * scale_c

    # Per-row (n, c) scale/shift, shape (R, 1); lane-broadcast in the kernel.
    scale_r = jnp.tile(scale_c, N).reshape(R, 1)
    shift_r = jnp.tile(shift_c, N).reshape(R, 1)

    # Lane-dense 2-D view: minor dim = H*W.  Pure reshape, no transpose,
    # no dtype cast (native dtype travels over HBM).
    x2d = x_nchw.reshape(R, L)

    # Row tiling: ~2 MiB of x per block (double-buffered in + out ~= 8 MiB of
    # VMEM for f32 -> fits the default scoped-VMEM budget on v5e/v6e/v7x).
    bytes_per_row = max(1, L * jnp.dtype(dtype).itemsize)
    target_bytes = 2 * 1024 * 1024
    max_rows = max(8, (target_bytes // bytes_per_row) // 8 * 8)
    if R <= max_rows:
        TR = R                      # single row-block == full dim (always legal)
    else:
        TR = int(max_rows)          # multiple of 8; last block may be partial
    grid = (pl.cdiv(R, TR),)

    out2d = pl.pallas_call(
        _bn_relu_kernel,
        out_shape=jax.ShapeDtypeStruct((R, L), dtype),
        grid=grid,
        in_specs=[
            pl.BlockSpec((TR, L), lambda i: (i, 0)),
            pl.BlockSpec((TR, 1), lambda i: (i, 0)),
            pl.BlockSpec((TR, 1), lambda i: (i, 0)),
        ],
        out_specs=pl.BlockSpec((TR, L), lambda i: (i, 0)),
        compiler_params=pltpu.CompilerParams(
            dimension_semantics=("parallel",)),
    )(x2d, scale_r, shift_r)

    return out2d.reshape(N, C, H, W)


if __name__ == "__main__":
    key = jax.random.PRNGKey(0)
    kx, kg, kb, km, kv = jax.random.split(key, 5)

    # Small shapes consistent with the module's forward (NCHW).
    N, C, H, W = 2, 4, 16, 16
    x = jax.random.normal(kx, (N, C, H, W), dtype=jnp.float32)

    # Deterministic synthetic BatchNorm2d parameters / running stats.
    gamma = 1.0 + 0.1 * jax.random.normal(kg, (C,), dtype=jnp.float32)
    beta = 0.1 * jax.random.normal(kb, (C,), dtype=jnp.float32)
    running_mean = 0.1 * jax.random.normal(km, (C,), dtype=jnp.float32)
    running_var = jnp.abs(1.0 + 0.1 * jax.random.normal(kv, (C,),
                                                        dtype=jnp.float32))

    out = post_activation(x, gamma, beta, running_mean, running_var)
    out = jax.block_until_ready(out)

    # Pure-JAX reference: eval-mode BatchNorm2d + ReLU.
    eps = 1e-5
    ref = (x - running_mean[None, :, None, None]) / jnp.sqrt(
        running_var[None, :, None, None] + eps)
    ref = ref * gamma[None, :, None, None] + beta[None, :, None, None]
    ref = jnp.maximum(ref, 0.0)

    assert out.shape == (N, C, H, W), out.shape
    assert out.dtype == x.dtype, out.dtype
    assert jnp.allclose(out, ref, atol=1e-4, rtol=1e-4), \
        float(jnp.max(jnp.abs(out - ref)))

    print("KERNEL_OK")
</pallas_src>

<mosaic_0001>
module attributes {stable_mosaic.version = 11 : i64} {
  func.func @_bn_relu_kernel(%arg0: i32, %arg1: memref<8x256xf32, #tpu.memory_space<vmem>>, %arg2: memref<8x1xf32, #tpu.memory_space<vmem>>, %arg3: memref<8x1xf32, #tpu.memory_space<vmem>>, %arg4: memref<8x256xf32, #tpu.memory_space<vmem>>) attributes {dimension_semantics = [#tpu.dimension_semantics<parallel>], iteration_bounds = array<i64: 1>, scalar_prefetch = 0 : i64, scratch_operands = 0 : i64, tpu.core_type = #tpu.core_type<tc>, window_params = [{transform_indices = @transform_0, window_bounds = array<i64: 8, 256>}, {transform_indices = @transform_1, window_bounds = array<i64: 8, 1>}, {transform_indices = @transform_2, window_bounds = array<i64: 8, 1>}, {transform_indices = @transform_3, window_bounds = array<i64: 8, 256>}]} {
    %c0 = arith.constant 0 : index
    %c0_0 = arith.constant 0 : index
    %0 = vector.load %arg1[%c0, %c0_0] : memref<8x256xf32, #tpu.memory_space<vmem>>, vector<8x256xf32>
    %c0_1 = arith.constant 0 : index
    %c0_2 = arith.constant 0 : index
    %1 = vector.load %arg2[%c0_1, %c0_2] : memref<8x1xf32, #tpu.memory_space<vmem>>, vector<8x1xf32>
    %2 = vector.broadcast %1 : vector<8x1xf32> to vector<8x256xf32>
    %3 = arith.mulf %0, %2 : vector<8x256xf32>
    %c0_3 = arith.constant 0 : index
    %c0_4 = arith.constant 0 : index
    %4 = vector.load %arg3[%c0_3, %c0_4] : memref<8x1xf32, #tpu.memory_space<vmem>>, vector<8x1xf32>
    %5 = vector.broadcast %4 : vector<8x1xf32> to vector<8x256xf32>
    %6 = arith.addf %3, %5 : vector<8x256xf32>
    %cst = arith.constant 0.000000e+00 : f32
    %7 = vector.broadcast %cst : f32 to vector<8x256xf32>
    %8 = arith.maximumf %6, %7 : vector<8x256xf32>
    %c0_5 = arith.constant 0 : index
    %c0_6 = arith.constant 0 : index
    %9 = vector.load %arg4[%c0_5, %c0_6] : memref<8x256xf32, #tpu.memory_space<vmem>>, vector<8x256xf32>
    tpu.vector_store %arg4[%c0_5, %c0_6], %8 {strides = array<i32>} : memref<8x256xf32, #tpu.memory_space<vmem>>, vector<8x256xf32>,
    return
  }
  func.func @transform_0(%arg0: i32) -> (i32, i32) {
    %c0_i32 = arith.constant 0 : i32
    %c0_i32_0 = arith.constant 0 : i32
    return %arg0, %c0_i32 : i32, i32
  }
  func.func @transform_1(%arg0: i32) -> (i32, i32) {
    %c0_i32 = arith.constant 0 : i32
    %c0_i32_0 = arith.constant 0 : i32
    return %arg0, %c0_i32 : i32, i32
  }
  func.func @transform_2(%arg0: i32) -> (i32, i32) {
    %c0_i32 = arith.constant 0 : i32
    %c0_i32_0 = arith.constant 0 : i32
    return %arg0, %c0_i32 : i32, i32
  }
  func.func @transform_3(%arg0: i32) -> (i32, i32) {
    %c0_i32 = arith.constant 0 : i32
    %c0_i32_0 = arith.constant 0 : i32
    return %arg0, %c0_i32 : i32, i32
  }
}

</mosaic_0001>

<llo_original>
// kernel: tpu_custom_call.1
$region0: #{tpu_custom_call.1}
  #allocation0 [shape = 'u32[]', space=smem, size = 0x4, offset = 0x4, fixed_abs, tag = 'smem constant byte address 0x4 - core index']
  #allocation1 [shape = 'u32[144,128]{1,0:T(1,128)}', space=vmem, size = 0x12000, scoped, tag = 'internal scratch']
  %s0 = inlined_call_operand.vmem [shape: f32[8,256], index: 0, kind: input, shape index: {}]
  %s1 = inlined_call_operand.vmem [shape: f32[8,1], index: 1, kind: input, shape index: {}]
  %s2 = inlined_call_operand.vmem [shape: f32[8,1], index: 2, kind: input, shape index: {}]
  %s3 = inlined_call_operand.hbm [shape: f32[8,256], index: 3, kind: output, shape index: {}]
  %s4 = sld [smem:[#allocation0]]
  $region22: #{tpu_custom_call.1} parent=0
    _
  %s6 = ssub.s32 1, %s4
  %s7 = scalar_select 0, %s6, %s4
  $region1: #{tpu_custom_call.1} parent=0
    #allocation2 [shape = 'u8[8192]{0}', space=vmem, size = 0x2000, scoped, tag = 'output window, operand 0, single buffered']
    #allocation3 [shape = 's32[1]{0}', space=sflag, size = 0x4, scoped, tag = 'scoped memory for tpu_custom_call.1']
    %8 = vsyncpa [#allocation3], 0
    // Predicated region
    $region2: #{tpu_custom_call.1} parent=1 // pred_check
      _
    $region3: #{tpu_custom_call.1} parent=1 // pred_check_branch
      %10 = sbr.rel (0) target = $region5
    $region4: #{tpu_custom_call.1} parent=1 // pred_region
      _
    $region5: #{tpu_custom_call.1} parent=1 // pred_fallthru
      _
    // Predicated region
    $region6: #{tpu_custom_call.1} parent=1 // pred_check
      _
    $region7: #{tpu_custom_call.1} parent=1 // pred_check_branch
      %12 = sbr.rel (0) target = $region9
    $region8: #{tpu_custom_call.1} parent=1 // pred_region
      _
    $region9: #{tpu_custom_call.1} parent=1 // pred_fallthru
      _
    // Predicated region
    $region10: #{tpu_custom_call.1} parent=1 // pred_check
      _
    $region11: #{tpu_custom_call.1} parent=1 // pred_check_branch
      %14 = sbr.rel (0) target = $region13
    $region12: #{tpu_custom_call.1} parent=1 // pred_region
      _
    $region13: #{tpu_custom_call.1} parent=1 // pred_fallthru
      _
    %v15 = vld [vmem:[%s0] sm:$0xff]
    %v16 = vld [vmem:[%s0 + $0x8] sm:$0xff]
    %v17 = vld [vmem:[%s1] sm:$0xff]
    %19 = vset.pattern.permute.xlu0 0
    %20 = vperm.xlu0 %19, %v17
    %v21 = vpop.permute.xlu0 %20
    %v23 = vmul.f32 %v15, %v21
    %v24 = vmul.f32 %v16, %v21
    %v25 = vld [vmem:[%s2] sm:$0xff]
    %27 = vset.pattern.permute.xlu0 0
    %28 = vperm.xlu0 %27, %v25
    %v29 = vpop.permute.xlu0 %28
    %v31 = vadd.f32 %v23, %v29
    %v32 = vadd.f32 %v24, %v29
    %v33 = vmax.f32 %v31, 0.0
    %v34 = vmax.f32 %v32, 0.0
    %35 = vst [vmem:[#allocation2] sm:$0xff] %v33
    %36 = vst [vmem:[#allocation2 + $0x8] sm:$0xff] %v34
    // Predicated region
    $region14: #{tpu_custom_call.1} parent=1 // pred_check
      _
    $region15: #{tpu_custom_call.1} parent=1 // pred_check_branch
      %38 = sbr.rel (0) target = $region17
    $region16: #{tpu_custom_call.1} parent=1 // pred_region
      %s40 = ssub.s32 256, 256
      %41 = vsyncadd [#allocation3], %s40
      %s43 = sshll.u32 [#allocation2], 4
      %s44 = int_to_ptr.vmem [resolvable:$true] %s43
      %46 = dma.vmem_to_hbm [thread:$0]  %s44, 256, %s3, [#allocation3]
    $region17: #{tpu_custom_call.1} parent=1 // pred_fallthru
      _
    // Predicated region
    $region18: #{tpu_custom_call.1} parent=1 // pred_check
      _
    $region19: #{tpu_custom_call.1} parent=1 // pred_check_branch
      %48 = sbr.rel (0) target = $region21
    $region20: #{tpu_custom_call.1} parent=1 // pred_region
      %49 = dma.done [#allocation3], 256
    $region21: #{tpu_custom_call.1} parent=1 // pred_fallthru
      _
    %50 = vsyncpa [#allocation3], 1

</llo_original>
